<compile_context>
chip_gen: v7x
topology: tpu7x:2x2x1
jax: 0.10.0
libtpu: 0.0.40
codegen_flags: <defaults>
</compile_context>

<pallas_src>
import functools

import jax
import jax.numpy as jnp
from jax.experimental import pallas as pl
from jax.experimental.pallas import tpu as pltpu

EPS = 1e-5
TM_MAX = 512                   # max rows-of-output tile (M)
TN_MAX = 256                   # max output-channel tile (N); divides 512/1024/2048
VMEM_CAP = 40 * 1024 * 1024    # ceiling for the per-call derived VMEM limit


def _round_up(x, m):
    return ((x + m - 1) // m) * m


def _choose_tile_rows(M, max_rows=TM_MAX):
    """Pick a row tile. Avoids any M padding whenever M is 8-aligned and
    exposes >=2 row tiles when cheap (keeps both v7x TensorCores busy).
    Returns (row_tile, padded_M)."""
    Mp = M if M % 8 == 0 else _round_up(M, 16)   # tiny/odd M only (cheap pad)
    if Mp <= max_rows:
        if Mp == M and Mp >= 256 and Mp % 16 == 0:
            return Mp // 2, Mp                   # two parallel tiles, each >=128 rows
        return Mp, Mp                            # full-dim block (always legal)
    for d in (512, 256, 128, 64, 32, 16, 8):
        if d <= max_rows and Mp % d == 0:
            return d, Mp
    return 8, Mp


def _choose_tile_n(N):
    if N <= TN_MAX:
        return N                # full-dim block (handles 64, embed_size, ...)
    if N % TN_MAX == 0:
        return TN_MAX
    if N % 128 == 0:
        return 128
    return N


def _matmul_vmem_limit(tm, K, tn, out_bytes, has_residual):
    # Double-buffered operand bytes + f32 accumulator value + generous headroom.
    est = 2 * (tm * K * 2 + K * tn * 2 + tm * tn * out_bytes
               + (tm * tn * 2 if has_residual else 0) + tn * 4)
    est += tm * tn * 4
    return int(min(VMEM_CAP, max(16 << 20, est + est // 2 + (8 << 20))))


# ---------------------------------------------------------------------------
# Pallas kernels
# ---------------------------------------------------------------------------
def _matmul_kernel(*refs, relu, has_residual):
    """(tm,K)@(K,tn) single-shot MXU matmul, f32 accumulate, fused bias /
    residual / ReLU epilogue, bf16 (or f32 for the embed) output."""
    if has_residual:
        x_ref, w_ref, b_ref, r_ref, o_ref = refs
    else:
        x_ref, w_ref, b_ref, o_ref = refs
        r_ref = None
    acc = jnp.dot(x_ref[...], w_ref[...], preferred_element_type=jnp.float32)
    acc = acc + b_ref[...]
    if has_residual:
        acc = acc + r_ref[...].astype(jnp.float32)
    if relu:
        acc = jnp.maximum(acc, 0.0)
    o_ref[...] = acc.astype(o_ref.dtype)


def _max_reduce_kernel(p_ref, o_ref):
    # (tr, k*k, C) -> (tr, C): single bulk load + sublane reduce (XLU).
    o_ref[...] = jnp.max(p_ref[...], axis=1)


def _mean_reduce_kernel(x_ref, o_ref):
    # (N, HW, C) -> (N, C); mean in f32 regardless of the bf16 input.
    o_ref[...] = jnp.mean(x_ref[...].astype(jnp.float32), axis=1).astype(o_ref.dtype)


def pallas_matmul_bias(x, mp, relu=False, residual=None, out_dtype=jnp.bfloat16):
    """x:(M,K) bf16 @ unpadded bf16 weight (K,N) + f32 bias, fused epilogue.

    Grid is (m, n) with n innermost so the activation K-panel is DMA'd once per
    m tile; the weight block is re-read per m tile (small for ResNet50 layers).
    Optional `residual` (M,N) bf16 is added in f32 in the epilogue.
    """
    M, K = x.shape
    N = mp["N"]
    w, b = mp["w"], mp["b"]                 # (K, N) bf16, (1, N) f32 — unpadded
    tn = mp["tn"]
    tm, Mp = _choose_tile_rows(M)

    if x.dtype != jnp.bfloat16:
        x = x.astype(jnp.bfloat16)
    has_residual = residual is not None
    if has_residual and residual.dtype != jnp.bfloat16:
        residual = residual.astype(jnp.bfloat16)

    if Mp != M:                             # rare tiny/odd-M fallback only
        x = jnp.pad(x, ((0, Mp - M), (0, 0)))
        if has_residual:
            residual = jnp.pad(residual, ((0, Mp - M), (0, 0)))

    in_specs = [
        pl.BlockSpec((tm, K), lambda m, n: (m, 0)),   # constant over inner n sweep
        pl.BlockSpec((K, tn), lambda m, n: (0, n)),
        pl.BlockSpec((1, tn), lambda m, n: (0, n)),
    ]
    args = [x, w, b]
    if has_residual:
        in_specs.append(pl.BlockSpec((tm, tn), lambda m, n: (m, n)))
        args.append(residual)

    out = pl.pallas_call(
        functools.partial(_matmul_kernel, relu=relu, has_residual=has_residual),
        out_shape=jax.ShapeDtypeStruct((Mp, N), out_dtype),
        grid=(Mp // tm, N // tn),
        in_specs=in_specs,
        out_specs=pl.BlockSpec((tm, tn), lambda m, n: (m, n)),
        compiler_params=pltpu.CompilerParams(
            dimension_semantics=("parallel", "parallel"),
            vmem_limit_bytes=_matmul_vmem_limit(
                tm, K, tn, jnp.dtype(out_dtype).itemsize, has_residual)),
    )(*args)
    return out if Mp == M else out[:M]


# ---------------------------------------------------------------------------
# im2col glue + layer wrappers (plain-JAX glue; hot paths above are Pallas)
# ---------------------------------------------------------------------------
def _extract_patches(x, k, stride, pad, pad_value=0.0):
    """x: (N, H, W, C) NHWC (bf16) -> (N, Ho, Wo, k*k, C)."""
    N, H, W, C = x.shape
    xp = jnp.pad(x, ((0, 0), (pad, pad), (pad, pad), (0, 0)),
                 constant_values=pad_value)
    Hp, Wp = H + 2 * pad, W + 2 * pad
    Ho = (Hp - k) // stride + 1
    Wo = (Wp - k) // stride + 1
    taps = [xp[:, i:i + stride * Ho:stride, j:j + stride * Wo:stride, :]
            for i in range(k) for j in range(k)]
    return jnp.stack(taps, axis=3), Ho, Wo


def conv_bn(x, params, stride, relu, residual=None):
    """Folded conv + eval-mode BatchNorm (+ optional ReLU / fused residual)."""
    k = params["k"]
    N, H, W, C = x.shape
    if k == 1:
        # 1x1 conv: zero-copy — stride via slicing, then a free reshape.
        xs = x[:, ::stride, ::stride, :] if stride > 1 else x
        _, Ho, Wo, _ = xs.shape
        cols = xs.reshape(N * Ho * Wo, C)
    else:
        # TODO(synk): stream the k*k taps from the padded NHWC activation
        # (manual DMA / element-offset index_map) instead of im2col.
        patches, Ho, Wo = _extract_patches(x, k, stride, params["pad"])
        cols = patches.reshape(N * Ho * Wo, k * k * C)
    res2d = None if residual is None else residual.reshape(-1, params["N"])
    out = pallas_matmul_bias(cols, params, relu=relu, residual=res2d)
    return out.reshape(N, Ho, Wo, params["N"])


def max_pool(x, k=3, stride=2, pad=1):
    # TODO(synk): a direct (non-im2col) pooled read would cut HBM traffic ~k*k x;
    # kept as a bf16 patch-stack + Pallas reduce for robustness.
    N, H, W, C = x.shape
    patches, Ho, Wo = _extract_patches(x, k, stride, pad, pad_value=-jnp.inf)
    M = N * Ho * Wo
    p = patches.reshape(M, k * k, C)
    tr, Mp = _choose_tile_rows(M, max_rows=1024)
    if Mp != M:
        p = jnp.pad(p, ((0, Mp - M), (0, 0), (0, 0)))
    out = pl.pallas_call(
        _max_reduce_kernel,
        out_shape=jax.ShapeDtypeStruct((Mp, C), x.dtype),
        grid=(Mp // tr,),
        in_specs=[pl.BlockSpec((tr, k * k, C), lambda r: (r, 0, 0))],
        out_specs=pl.BlockSpec((tr, C), lambda r: (r, 0)),
        compiler_params=pltpu.CompilerParams(
            dimension_semantics=("parallel",),
            vmem_limit_bytes=32 * 1024 * 1024),
    )(p)
    out = out if Mp == M else out[:M]
    return out.reshape(N, Ho, Wo, C)


def global_avg_pool(x):
    # Whole feature map is tiny (N*HW*2048 bf16) -> single grid step.
    N, H, W, C = x.shape
    xr = x.reshape(N, H * W, C)
    return pl.pallas_call(
        _mean_reduce_kernel,
        out_shape=jax.ShapeDtypeStruct((N, C), x.dtype),
        grid=(1,),
        in_specs=[pl.BlockSpec((N, H * W, C), lambda i: (0, 0, 0))],
        out_specs=pl.BlockSpec((N, C), lambda i: (0, 0)),
        compiler_params=pltpu.CompilerParams(
            dimension_semantics=("arbitrary",),
            vmem_limit_bytes=32 * 1024 * 1024),
    )(xr)


# ---------------------------------------------------------------------------
# Parameter construction (deterministic, synthetic)
# ---------------------------------------------------------------------------
def _make_matmul_params(w_mat, bias, k=1, pad=0):
    """Unpadded bf16 weight (K,N) + f32 bias (1,N); tile sizes chosen at init."""
    K, N = w_mat.shape
    return {"w": w_mat.astype(jnp.bfloat16),
            "b": bias.astype(jnp.float32).reshape(1, N),
            "K": K, "N": N, "tn": _choose_tile_n(N),
            "k": k, "pad": pad}


def init_conv_bn(key, in_c, out_c, k, pad):
    kw, kg, kb, km, kv = jax.random.split(key, 5)
    fan_in = in_c * k * k
    w = jax.random.normal(kw, (out_c, in_c, k, k), jnp.float32) * jnp.sqrt(2.0 / fan_in)
    gamma = 1.0 + 0.1 * jax.random.normal(kg, (out_c,), jnp.float32)
    beta = 0.1 * jax.random.normal(kb, (out_c,), jnp.float32)
    mean = 0.1 * jax.random.normal(km, (out_c,), jnp.float32)
    var = 1.0 + 0.1 * jax.random.uniform(kv, (out_c,), jnp.float32)
    scale = gamma / jnp.sqrt(var + EPS)       # fold eval-mode BN into the conv
    w = w * scale[:, None, None, None]
    bias = beta - mean * scale
    # PyTorch conv weight (out, in, kh, kw) -> im2col matrix (kh*kw*in, out)
    w_mat = jnp.transpose(w, (2, 3, 1, 0)).reshape(k * k * in_c, out_c)
    return _make_matmul_params(w_mat, bias, k=k, pad=pad)


def init_bottleneck(key, in_c, planes, stride):
    keys = jax.random.split(key, 4)
    out_c = planes * 4
    p = {
        "c1": init_conv_bn(keys[0], in_c, planes, 1, 0),
        "c2": init_conv_bn(keys[1], planes, planes, 3, 1),
        "c3": init_conv_bn(keys[2], planes, out_c, 1, 0),
        "stride": stride,
    }
    if stride != 1 or in_c != out_c:
        p["down"] = init_conv_bn(keys[3], in_c, out_c, 1, 0)
    return p


def bottleneck_forward(x, p):
    out = conv_bn(x, p["c1"], stride=1, relu=True)
    out = conv_bn(out, p["c2"], stride=p["stride"], relu=True)
    if "down" in p:
        identity = conv_bn(x, p["down"], stride=p["stride"], relu=False)
    else:
        identity = x
    # residual add + ReLU fused into the c3 matmul epilogue (bf16 in, f32 add)
    return conv_bn(out, p["c3"], stride=1, relu=True, residual=identity)


def init_encoder(key, embed_size):
    keys = jax.random.split(key, 8)
    params = {"stem": init_conv_bn(keys[0], 3, 64, 7, 3)}
    layer_cfg = [(64, 3, 1), (128, 4, 2), (256, 6, 2), (512, 3, 2)]  # ResNet50
    in_c = 64
    layers = []
    for li, (planes, blocks, stride) in enumerate(layer_cfg):
        bkeys = jax.random.split(keys[1 + li], blocks)
        blist = []
        for bi in range(blocks):
            s = stride if bi == 0 else 1
            blist.append(init_bottleneck(bkeys[bi], in_c, planes, s))
            in_c = planes * 4
        layers.append(blist)
    params["layers"] = layers
    # self.embed = nn.Linear(resnet.fc.in_features=2048, embed_size)
    ke_w, ke_b = jax.random.split(keys[5], 2)
    bound = 1.0 / jnp.sqrt(2048.0)
    ew = jax.random.uniform(ke_w, (embed_size, 2048), jnp.float32, -bound, bound)
    eb = jax.random.uniform(ke_b, (embed_size,), jnp.float32, -bound, bound)
    params["embed"] = _make_matmul_params(ew.T, eb)   # transpose once at init
    return params


def encoder_forward(params, images_nchw):
    # NCHW (PyTorch) -> NHWC bf16 once; everything downstream stays bf16.
    x = jnp.transpose(images_nchw, (0, 2, 3, 1)).astype(jnp.bfloat16)
    x = conv_bn(x, params["stem"], stride=2, relu=True)   # conv1 + bn1 + relu
    x = max_pool(x, 3, 2, 1)                               # maxpool
    for blist in params["layers"]:                          # layer1..layer4
        for bp in blist:
            x = bottleneck_forward(x, bp)
    feats = global_avg_pool(x)      # AdaptiveAvgPool2d(1) + view(N, -1) -> (N, 2048)
    # features = self.embed(features):  feats @ W.T + b   (f32 output)
    return pallas_matmul_bias(feats, params["embed"], relu=False,
                              out_dtype=jnp.float32)


if __name__ == "__main__":
    key = jax.random.PRNGKey(0)
    pkey, xkey = jax.random.split(key)
    embed_size = 64
    params = init_encoder(pkey, embed_size)
    images = jax.random.normal(xkey, (2, 3, 16, 16), jnp.float32)  # NCHW, 3-channel
    feats = encoder_forward(params, images)
    feats = jax.block_until_ready(feats)
    assert feats.shape == (2, embed_size)
    assert bool(jnp.all(jnp.isfinite(feats)))
    print("KERNEL_OK")
</pallas_src>

<mosaic_0001>
module attributes {stable_mosaic.version = 11 : i64} {
  func.func @_matmul_kernel(%arg0: i32, %arg1: i32, %arg2: memref<128x147xbf16, #tpu.memory_space<vmem>>, %arg3: memref<147x64xbf16, #tpu.memory_space<vmem>>, %arg4: memref<1x64xf32, #tpu.memory_space<vmem>>, %arg5: memref<128x64xbf16, #tpu.memory_space<vmem>>) attributes {dimension_semantics = [#tpu.dimension_semantics<parallel>, #tpu.dimension_semantics<parallel>], iteration_bounds = array<i64: 1, 1>, scalar_prefetch = 0 : i64, scratch_operands = 0 : i64, tpu.core_type = #tpu.core_type<tc>, window_params = [{transform_indices = @transform_0, window_bounds = array<i64: 128, 147>}, {transform_indices = @transform_1, window_bounds = array<i64: 147, 64>}, {transform_indices = @transform_2, window_bounds = array<i64: 1, 64>}, {transform_indices = @transform_3, window_bounds = array<i64: 128, 64>}]} {
    %c0 = arith.constant 0 : index
    %c0_0 = arith.constant 0 : index
    %0 = vector.load %arg2[%c0, %c0_0] : memref<128x147xbf16, #tpu.memory_space<vmem>>, vector<128x147xbf16>
    %c0_1 = arith.constant 0 : index
    %c0_2 = arith.constant 0 : index
    %1 = vector.load %arg3[%c0_1, %c0_2] : memref<147x64xbf16, #tpu.memory_space<vmem>>, vector<147x64xbf16>
    %cst = arith.constant dense<0.000000e+00> : vector<128x64xf32>
    %2 = tpu.matmul %0, %1, %cst {dimension_numbers = #tpu.dot_dimension_numbers<[1], [0], [0], [1], [0, 0, 1, 1], [], []>} : vector<128x147xbf16>, vector<147x64xbf16>, vector<128x64xf32> -> vector<128x64xf32>
    %c0_3 = arith.constant 0 : index
    %c0_4 = arith.constant 0 : index
    %3 = vector.load %arg4[%c0_3, %c0_4] : memref<1x64xf32, #tpu.memory_space<vmem>>, vector<1x64xf32>
    %4 = vector.broadcast %3 : vector<1x64xf32> to vector<128x64xf32>
    %5 = arith.addf %2, %4 : vector<128x64xf32>
    %cst_5 = arith.constant 0.000000e+00 : f32
    %6 = vector.broadcast %cst_5 : f32 to vector<128x64xf32>
    %7 = arith.maximumf %5, %6 : vector<128x64xf32>
    %8 = arith.truncf %7 : vector<128x64xf32> to vector<128x64xbf16>
    %c0_6 = arith.constant 0 : index
    %c0_7 = arith.constant 0 : index
    %9 = vector.load %arg5[%c0_6, %c0_7] : memref<128x64xbf16, #tpu.memory_space<vmem>>, vector<128x64xbf16>
    tpu.vector_store %arg5[%c0_6, %c0_7], %8 {strides = array<i32>} : memref<128x64xbf16, #tpu.memory_space<vmem>>, vector<128x64xbf16>,
    return
  }
  func.func @transform_0(%arg0: i32, %arg1: i32) -> (i32, i32) {
    %c0_i32 = arith.constant 0 : i32
    %c0_i32_0 = arith.constant 0 : i32
    return %arg0, %c0_i32 : i32, i32
  }
  func.func @transform_1(%arg0: i32, %arg1: i32) -> (i32, i32) {
    %c0_i32 = arith.constant 0 : i32
    %c0_i32_0 = arith.constant 0 : i32
    return %c0_i32, %arg1 : i32, i32
  }
  func.func @transform_2(%arg0: i32, %arg1: i32) -> (i32, i32) {
    %c0_i32 = arith.constant 0 : i32
    %c0_i32_0 = arith.constant 0 : i32
    return %c0_i32, %arg1 : i32, i32
  }
  func.func @transform_3(%arg0: i32, %arg1: i32) -> (i32, i32) {
    %c0_i32 = arith.constant 0 : i32
    return %arg0, %arg1 : i32, i32
  }
}

</mosaic_0001>

<llo_original>
// kernel: tpu_custom_call.1
$region0: #{tpu_custom_call.1}
  #allocation0 [shape = 'u32[]', space=smem, size = 0x4, offset = 0x4, fixed_abs, tag = 'smem constant byte address 0x4 - core index']
  #allocation1 [shape = 'u32[144,128]{1,0:T(1,128)}', space=vmem, size = 0x12000, scoped, tag = 'internal scratch']
  %s0 = inlined_call_operand.vmem [shape: bf16[128,147], index: 0, kind: input, shape index: {}]
  %s1 = inlined_call_operand.vmem [shape: bf16[147,64], index: 1, kind: input, shape index: {}]
  %s2 = inlined_call_operand.vmem [shape: f32[1,64], index: 2, kind: input, shape index: {}]
  %s3 = inlined_call_operand.vmem [shape: bf16[128,64], index: 3, kind: output, shape index: {}]
  %s4 = sld [smem:[#allocation0]]
  $region22: #{tpu_custom_call.1} parent=0
    _
  %s6 = ssub.s32 1, %s4
  %s7 = scalar_select 0, %s6, %s4
  // Predicated region
  $region2: #{tpu_custom_call.1} parent=0 // pred_check
    _
  $region3: #{tpu_custom_call.1} parent=0 // pred_check_branch
    %9 = sbr.rel (0) target = $region5
  $region4: #{tpu_custom_call.1} parent=0 // pred_region
    _
  $region5: #{tpu_custom_call.1} parent=0 // pred_fallthru
    _
  // Predicated region
  $region6: #{tpu_custom_call.1} parent=0 // pred_check
    _
  $region7: #{tpu_custom_call.1} parent=0 // pred_check_branch
    %11 = sbr.rel (0) target = $region9
  $region8: #{tpu_custom_call.1} parent=0 // pred_region
    _
  $region9: #{tpu_custom_call.1} parent=0 // pred_fallthru
    _
  // Predicated region
  $region10: #{tpu_custom_call.1} parent=0 // pred_check
    _
  $region11: #{tpu_custom_call.1} parent=0 // pred_check_branch
    %13 = sbr.rel (0) target = $region13
  $region12: #{tpu_custom_call.1} parent=0 // pred_region
    _
  $region13: #{tpu_custom_call.1} parent=0 // pred_fallthru
    _
  %v15 = vld [vmem:[%s0] sm:$0xff]
  %v16 = vld [vmem:[%s0 + $0x8] sm:$0xff]
  %v17 = vld [vmem:[%s0 + $0x10] sm:$0xff]
  %v18 = vld [vmem:[%s0 + $0x18] sm:$0xff]
  %v19 = vld [vmem:[%s0 + $0x20] sm:$0xff]
  %v20 = vld [vmem:[%s0 + $0x28] sm:$0xff]
  %v21 = vld [vmem:[%s0 + $0x30] sm:$0xff]
  %v22 = vld [vmem:[%s0 + $0x38] sm:$0xff]
  %v23 = vld [vmem:[%s0 + $0x40] sm:$0xff]
  %v24 = vld [vmem:[%s0 + $0x48] sm:$0xff]
  %v25 = vld [vmem:[%s0 + $0x50] sm:$0xff]
  %v26 = vld [vmem:[%s0 + $0x58] sm:$0xff]
  %v27 = vld [vmem:[%s0 + $0x60] sm:$0xff]
  %v28 = vld [vmem:[%s0 + $0x68] sm:$0xff]
  %v29 = vld [vmem:[%s0 + $0x70] sm:$0xff]
  %v30 = vld [vmem:[%s0 + $0x78] sm:$0xff]
  %v31 = vld [vmem:[%s1] sm:$0xf]
  %v32 = vld [vmem:[%s1 + $0x4] sm:$0xf]
  %v33 = vld [vmem:[%s1 + $0x8] sm:$0xf]
  %v34 = vld [vmem:[%s1 + $0xc] sm:$0xf]
  %v35 = vld [vmem:[%s1 + $0x10] sm:$0xf]
  %v36 = vld [vmem:[%s1 + $0x14] sm:$0xf]
  %v37 = vld [vmem:[%s1 + $0x18] sm:$0xf]
  %v38 = vld [vmem:[%s1 + $0x1c] sm:$0xf]
  %v39 = vld [vmem:[%s1 + $0x20] sm:$0xf]
  %v40 = vld [vmem:[%s1 + $0x24] sm:$0xf]
  %v41 = vld [vmem:[%s1 + $0x28] sm:$0xf]
  %v42 = vld [vmem:[%s1 + $0x2c] sm:$0xf]
  %v43 = vld [vmem:[%s1 + $0x30] sm:$0xf]
  %v44 = vld [vmem:[%s1 + $0x34] sm:$0xf]
  %v45 = vld [vmem:[%s1 + $0x38] sm:$0xf]
  %v46 = vld [vmem:[%s1 + $0x3c] sm:$0xf]
  %v47 = vld [vmem:[%s1 + $0x40] sm:$0xf]
  %v48 = vld [vmem:[%s1 + $0x44] sm:$0xf]
  %v49 = vld [vmem:[%s1 + $0x48] sm:$0x3]
  %v50 = vld [vmem:[%s2] sm:$0x1]
  %v52 = vlaneseq
  %v53 = vshrl.u32 %v52, 7
  %v54 = vsub.s32 0, %v53
  %v55 = vrot.slane %v50, %v54
  %v73 = vunpack.c.l.b16 %v15
  %v74 = vunpack.c.h.b16 %v15
  %v75 = vunpack.c.l.b16 %v16
  %v76 = vunpack.c.h.b16 %v16
  %v77 = vunpack.c.l.b16 %v17
  %v78 = vunpack.c.h.b16 %v17
  %v79 = vunpack.c.l.b16 %v18
  %v80 = vunpack.c.h.b16 %v18
  %v81 = vunpack.c.l.b16 %v19
  %v82 = vunpack.c.h.b16 %v19
  %v83 = vunpack.c.l.b16 %v20
  %v84 = vunpack.c.h.b16 %v20
  %v85 = vunpack.c.l.b16 %v21
  %v86 = vunpack.c.h.b16 %v21
  %v87 = vunpack.c.l.b16 %v22
  %v88 = vunpack.c.h.b16 %v22
  %v89 = vunpack.c.l.b16 %v23
  %v90 = vunpack.c.h.b16 %v23
  %v91 = vunpack.c.l.b16 %v24
  %v92 = vunpack.c.h.b16 %v24
  %v93 = vunpack.c.l.b16 %v25
  %v94 = vunpack.c.h.b16 %v25
  %v95 = vunpack.c.l.b16 %v26
  %v96 = vunpack.c.h.b16 %v26
  %v97 = vunpack.c.l.b16 %v27
  %v98 = vunpack.c.h.b16 %v27
  %v99 = vunpack.c.l.b16 %v28
  %v100 = vunpack.c.h.b16 %v28
  %v101 = vunpack.c.l.b16 %v29
  %v102 = vunpack.c.h.b16 %v29
  %v103 = vunpack.c.l.b16 %v30
  %v104 = vunpack.c.h.b16 %v30
  %v105 = vpack.c.b16 %v75, %v73
  %v106 = vpack.c.b16 %v76, %v74
  %v107 = vpack.c.b16 %v79, %v77
  %v108 = vpack.c.b16 %v80, %v78
  %v109 = vpack.c.b16 %v83, %v81
  %v110 = vpack.c.b16 %v84, %v82
  %v111 = vpack.c.b16 %v87, %v85
  %v112 = vpack.c.b16 %v88, %v86
  %v113 = vpack.c.b16 %v91, %v89
  %v114 = vpack.c.b16 %v92, %v90
  %v115 = vpack.c.b16 %v95, %v93
  %v116 = vpack.c.b16 %v96, %v94
  %v117 = vpack.c.b16 %v99, %v97
  %v118 = vpack.c.b16 %v100, %v98
  %v119 = vpack.c.b16 %v103, %v101
  %v120 = vpack.c.b16 %v104, %v102
  %v148 = vunpack.c.l.b16 %v31
  %v149 = vunpack.c.l.b16 %v32
  %v150 = vunpack.c.l.b16 %v33
  %v151 = vunpack.c.l.b16 %v34
  %v152 = vunpack.c.l.b16 %v35
  %v153 = vunpack.c.l.b16 %v36
  %v154 = vunpack.c.l.b16 %v37
  %v155 = vunpack.c.l.b16 %v38
  %v156 = vunpack.c.l.b16 %v39
  %v157 = vunpack.c.l.b16 %v40
  %v158 = vunpack.c.l.b16 %v41
  %v159 = vunpack.c.l.b16 %v42
  %v160 = vunpack.c.l.b16 %v43
  %v161 = vunpack.c.l.b16 %v44
  %v162 = vunpack.c.l.b16 %v45
  %v163 = vunpack.c.l.b16 %v46
  %v164 = vunpack.c.l.b16 %v47
  %v165 = vunpack.c.l.b16 %v48
  %v166 = vunpack.c.l.b16 %v49
  %v167 = vpack.c.b16 %v149, %v148
  %v168 = vpack.c.b16 %v151, %v150
  %v169 = vpack.c.b16 %v153, %v152
  %v170 = vpack.c.b16 %v155, %v154
  %v171 = vpack.c.b16 %v157, %v156
  %v172 = vpack.c.b16 %v159, %v158
  %v173 = vpack.c.b16 %v161, %v160
  %v174 = vpack.c.b16 %v163, %v162
  %v175 = vpack.c.b16 %v165, %v164
  %v176 = vpack.c.b16 %v166, %v166
  %vm186 = vcmask 154624
  %v188 = vsel %vm186, %v106, 0
  %v191 = vsel %vm186, %v108, 0
  %v194 = vsel %vm186, %v110, 0
  %v197 = vsel %vm186, %v112, 0
  %v200 = vsel %vm186, %v114, 0
  %v203 = vsel %vm186, %v116, 0
  %v206 = vsel %vm186, %v118, 0
  %v209 = vsel %vm186, %v120, 0
  %vm211 = vcmask 1040384
  %vm212 = vcmask 1041408
  %v213 = vsel %vm211, 4294967295, 65535
  %v214 = vsel %vm212, %v213, 0
  %v216 = vand.u32 %v176, %v214
  %218 = vmatprep.subr.bf16.mxu0 0
  %219 = vmatpush1.bf16.msra.mxu0 %v167
  %220 = vmatprep.subr.bf16.mxu0 0
  %221 = vmatpush1.bf16.msra.mxu0 %v168
  %222 = vmatprep.subr.bf16.mxu0 0
  %223 = vmatpush1.bf16.msra.mxu0 %v169
  %224 = vmatprep.subr.bf16.mxu0 0
  %225 = vmatpush1.bf16.msra.mxu0 %v170
  %226 = vmatprep.subr.bf16.mxu0 0
  %227 = vmatpush1.bf16.msra.mxu0 %v171
  %228 = vmatprep.subr.bf16.mxu0 0
  %229 = vmatpush1.bf16.msra.mxu0 %v172
  %230 = vmatprep.subr.bf16.mxu0 0
  %231 = vmatpush1.bf16.msra.mxu0 %v173
  %232 = vmatprep.subr.bf16.mxu0 0
  %233 = vmatpush1.bf16.msra.mxu0 %v174
  %234 = vmatprep.subr.bf16.mxu0 0
  %235 = vmatpush1.bf16.msra.mxu0 %v175
  %236 = vmatprep.subr.bf16.mxu0 0
  %237 = vmatpush1.bf16.msra.mxu0 %v216
  %238 = vmatprep.subr.bf16.mxu0 0
  %239 = vmatpush1.bf16.msra.mxu0 0
  %240 = vmatprep.subr.bf16.mxu0 0
  %241 = vmatpush1.bf16.msra.mxu0 0
  %242 = vmatprep.subr.bf16.mxu0 0
  %243 = vmatpush1.bf16.msra.mxu0 0
  %244 = vmatprep.subr.bf16.mxu0 0
  %245 = vmatpush1.bf16.msra.mxu0 0
  %246 = vmatprep.subr.bf16.mxu0 0
  %247 = vmatpush1.bf16.msra.mxu0 0
  %248 = vmatprep.subr.bf16.mxu0 0
  %249 = vmatpush1.bf16.msra.mxu0 0
  %250 = vmatprep.mubr.bf16.mxu0 %v188
  %251 = vmatmul.mubr.bf16.gmra.mrb[0].mxu0 %v105
  %v252 = vpop.f32.mrb[0].mxu0
  %v253 = vadd.f32 %v55, %v252
  %v254 = vpop.f32.mrb[0].mxu0
  %v255 = vpop.f32.mrb[0].mxu0
  %v256 = vadd.f32 %v55, %v255
  %v257 = vpop.f32.mrb[0].mxu0
  %258 = vmatprep.mubr.bf16.mxu0 %v191
  %259 = vmatmul.mubr.bf16.gmra.mrb[0].mxu0 %v107
  %v260 = vpop.f32.mrb[0].mxu0
  %v261 = vadd.f32 %v55, %v260
  %v262 = vpop.f32.mrb[0].mxu0
  %v263 = vpop.f32.mrb[0].mxu0
  %v264 = vadd.f32 %v55, %v263
  %v265 = vpop.f32.mrb[0].mxu0
  %266 = vmatprep.mubr.bf16.mxu0 %v194
  %267 = vmatmul.mubr.bf16.gmra.mrb[0].mxu0 %v109
  %v268 = vpop.f32.mrb[0].mxu0
  %v269 = vadd.f32 %v55, %v268
  %v270 = vpop.f32.mrb[0].mxu0
  %v271 = vpop.f32.mrb[0].mxu0
  %v272 = vadd.f32 %v55, %v271
  %v273 = vpop.f32.mrb[0].mxu0
  %274 = vmatprep.mubr.bf16.mxu0 %v197
  %275 = vmatmul.mubr.bf16.gmra.mrb[0].mxu0 %v111
  %v276 = vpop.f32.mrb[0].mxu0
  %v277 = vadd.f32 %v55, %v276
  %v278 = vpop.f32.mrb[0].mxu0
  %v279 = vpop.f32.mrb[0].mxu0
  %v280 = vadd.f32 %v55, %v279
  %v281 = vpop.f32.mrb[0].mxu0
  %282 = vmatprep.mubr.bf16.mxu0 %v200
  %283 = vmatmul.mubr.bf16.gmra.mrb[0].mxu0 %v113
  %v284 = vpop.f32.mrb[0].mxu0
  %v285 = vadd.f32 %v55, %v284
  %v286 = vpop.f32.mrb[0].mxu0
  %v287 = vpop.f32.mrb[0].mxu0
  %v288 = vadd.f32 %v55, %v287
  %v289 = vpop.f32.mrb[0].mxu0
  %290 = vmatprep.mubr.bf16.mxu0 %v203
  %291 = vmatmul.mubr.bf16.gmra.mrb[0].mxu0 %v115
  %v292 = vpop.f32.mrb[0].mxu0
  %v293 = vadd.f32 %v55, %v292
  %v294 = vpop.f32.mrb[0].mxu0
  %v295 = vpop.f32.mrb[0].mxu0
  %v296 = vadd.f32 %v55, %v295
  %v297 = vpop.f32.mrb[0].mxu0
  %298 = vmatprep.mubr.bf16.mxu0 %v206
  %299 = vmatmul.mubr.bf16.gmra.mrb[0].mxu0 %v117
  %v300 = vpop.f32.mrb[0].mxu0
  %v301 = vadd.f32 %v55, %v300
  %v302 = vpop.f32.mrb[0].mxu0
  %v303 = vpop.f32.mrb[0].mxu0
  %v304 = vadd.f32 %v55, %v303
  %v305 = vpop.f32.mrb[0].mxu0
  %306 = vmatprep.mubr.bf16.mxu0 %v209
  %307 = vmatmul.mubr.bf16.gmra.mrb[0].mxu0 %v119
  %v308 = vpop.f32.mrb[0].mxu0
  %v309 = vadd.f32 %v55, %v308
  %v310 = vpop.f32.mrb[0].mxu0
  %v311 = vpop.f32.mrb[0].mxu0
  %v312 = vadd.f32 %v55, %v311
  %v313 = vpop.f32.mrb[0].mxu0
  %314 = vdwg.mxu0
  %v315 = vmax.f32 %v253, 0.0
  %v316 = vmax.f32 %v256, 0.0
  %v317 = vmax.f32 %v261, 0.0
  %v318 = vmax.f32 %v264, 0.0
  %v319 = vmax.f32 %v269, 0.0
  %v320 = vmax.f32 %v272, 0.0
  %v321 = vmax.f32 %v277, 0.0
  %v322 = vmax.f32 %v280, 0.0
  %v323 = vmax.f32 %v285, 0.0
  %v324 = vmax.f32 %v288, 0.0
  %v325 = vmax.f32 %v293, 0.0
  %v326 = vmax.f32 %v296, 0.0
  %v327 = vmax.f32 %v301, 0.0
  %v328 = vmax.f32 %v304, 0.0
  %v329 = vmax.f32 %v309, 0.0
  %v330 = vmax.f32 %v312, 0.0
  %v331 = vpack.c.bf16 %v316, %v315
  %v332 = vpack.c.bf16 %v318, %v317
  %v333 = vpack.c.bf16 %v320, %v319
  %v334 = vpack.c.bf16 %v322, %v321
  %v335 = vpack.c.bf16 %v324, %v323
  %v336 = vpack.c.bf16 %v326, %v325
  %v337 = vpack.c.bf16 %v328, %v327
  %v338 = vpack.c.bf16 %v330, %v329
  %v347 = vunpack.c.l.b16 %v331
  %v348 = vunpack.c.h.b16 %v331
  %v349 = vunpack.c.l.b16 %v332
  %v350 = vunpack.c.h.b16 %v332
  %v351 = vunpack.c.l.b16 %v333
  %v352 = vunpack.c.h.b16 %v333
  %v353 = vunpack.c.l.b16 %v334
  %v354 = vunpack.c.h.b16 %v334
  %v355 = vunpack.c.l.b16 %v335
  %v356 = vunpack.c.h.b16 %v335
  %v357 = vunpack.c.l.b16 %v336
  %v358 = vunpack.c.h.b16 %v336
  %v359 = vunpack.c.l.b16 %v337
  %v360 = vunpack.c.h.b16 %v337
  %v361 = vunpack.c.l.b16 %v338
  %v362 = vunpack.c.h.b16 %v338
  %v363 = vpack.c.b16 %v347, %v347
  %v364 = vpack.c.b16 %v348, %v348
  %v365 = vpack.c.b16 %v349, %v349
  %v366 = vpack.c.b16 %v350, %v350
  %v367 = vpack.c.b16 %v351, %v351
  %v368 = vpack.c.b16 %v352, %v352
  %v369 = vpack.c.b16 %v353, %v353
  %v370 = vpack.c.b16 %v354, %v354
  %v371 = vpack.c.b16 %v355, %v355
  %v372 = vpack.c.b16 %v356, %v356
  %v373 = vpack.c.b16 %v357, %v357
  %v374 = vpack.c.b16 %v358, %v358
  %v375 = vpack.c.b16 %v359, %v359
  %v376 = vpack.c.b16 %v360, %v360
  %v377 = vpack.c.b16 %v361, %v361
  %v378 = vpack.c.b16 %v362, %v362
  %vm395 = vcmask 519168
  %396 = vst.msk [vmem:[%s3] sm:$0xf] %vm395, %v363
  %397 = vst.msk [vmem:[%s3 + $0x4] sm:$0xf] %vm395, %v364
  %398 = vst.msk [vmem:[%s3 + $0x8] sm:$0xf] %vm395, %v365
  %399 = vst.msk [vmem:[%s3 + $0xc] sm:$0xf] %vm395, %v366
  %400 = vst.msk [vmem:[%s3 + $0x10] sm:$0xf] %vm395, %v367
  %401 = vst.msk [vmem:[%s3 + $0x14] sm:$0xf] %vm395, %v368
  %402 = vst.msk [vmem:[%s3 + $0x18] sm:$0xf] %vm395, %v369
  %403 = vst.msk [vmem:[%s3 + $0x1c] sm:$0xf] %vm395, %v370
  %404 = vst.msk [vmem:[%s3 + $0x20] sm:$0xf] %vm395, %v371
  %405 = vst.msk [vmem:[%s3 + $0x24] sm:$0xf] %vm395, %v372
  %406 = vst.msk [vmem:[%s3 + $0x28] sm:$0xf] %vm395, %v373
  %407 = vst.msk [vmem:[%s3 + $0x2c] sm:$0xf] %vm395, %v374
  %408 = vst.msk [vmem:[%s3 + $0x30] sm:$0xf] %vm395, %v375
  %409 = vst.msk [vmem:[%s3 + $0x34] sm:$0xf] %vm395, %v376
  %410 = vst.msk [vmem:[%s3 + $0x38] sm:$0xf] %vm395, %v377
  %411 = vst.msk [vmem:[%s3 + $0x3c] sm:$0xf] %vm395, %v378
  // Predicated region
  $region14: #{tpu_custom_call.1} parent=0 // pred_check
    _
  $region15: #{tpu_custom_call.1} parent=0 // pred_check_branch
    %413 = sbr.rel (0) target = $region17
  $region16: #{tpu_custom_call.1} parent=0 // pred_region
    _
  $region17: #{tpu_custom_call.1} parent=0 // pred_fallthru
    _
  // Predicated region
  $region18: #{tpu_custom_call.1} parent=0 // pred_check
    _
  $region19: #{tpu_custom_call.1} parent=0 // pred_check_branch
    %415 = sbr.rel (0) target = $region21
  $region20: #{tpu_custom_call.1} parent=0 // pred_region
    _
  $region21: #{tpu_custom_call.1} parent=0 // pred_fallthru
    _

</llo_original>
